<compile_context>
chip_gen: v6e
topology: v6e:2x2x1
jax: 0.10.0
libtpu: 0.0.40
codegen_flags: <defaults>
</compile_context>

<pallas_src>
import functools

import jax
import jax.numpy as jnp
from jax.experimental import pallas as pl
from jax.experimental.pallas import tpu as pltpu


def _round_up(a: int, b: int) -> int:
    return (a + b - 1) // b * b


def _keep_threshold(dropout_p: float) -> int:
    # element kept iff bits >= threshold, with bits uniform in [0, 2^31)
    return min(int(round(float(dropout_p) * float(1 << 31))), (1 << 31) - 1)


def _vmem_limit_bytes(tile_m, chunk, d_model, w_dtype, apply_dropout):
    w_b = jnp.dtype(w_dtype).itemsize
    per_step = (tile_m * d_model * 4          # x row tile (f32 in HBM)
                + d_model * chunk * w_b       # W1^T chunk
                + chunk * 4                   # b1 chunk
                + chunk * d_model * w_b       # W2^T chunk
                + d_model * 4                 # b2
                + tile_m * d_model * 4)       # output tile
    if apply_dropout:
        per_step += tile_m * chunk * 4        # dropout bits tile
    total = 2 * per_step + tile_m * d_model * 4 + (8 << 20)  # dbl-buffers + acc + headroom
    return int(min(max(total, 16 << 20), 100 << 20))


def _ffn_kernel(*refs, keep_threshold: int, inv_keep: float, apply_dropout: bool):
    """One (row_tile, d_ff_chunk) grid step.

    grid = (row tiles, d_ff chunks); the d_ff axis is the reduction axis of the
    second matmul and accumulates into an f32 VMEM scratch.
    """
    if apply_dropout:
        x_ref, w1_ref, b1_ref, w2_ref, b2_ref, bits_ref, o_ref, acc_ref = refs
    else:
        x_ref, w1_ref, b1_ref, w2_ref, b2_ref, o_ref, acc_ref = refs
        bits_ref = None

    k = pl.program_id(1)

    @pl.when(k == 0)
    def _init():
        acc_ref[...] = jnp.zeros_like(acc_ref)

    # First linear + ReLU for this d_ff chunk (MXU, f32 accumulation).
    x = x_ref[...].astype(w1_ref.dtype)
    h = jnp.dot(x, w1_ref[...], preferred_element_type=jnp.float32)
    h = jnp.maximum(h + b1_ref[...], 0.0)

    # Inverted dropout: single integer compare + select over the chunk.
    # The 1/(1-p) rescale is applied once to the d_model-wide output below.
    if apply_dropout:
        keep = bits_ref[...] >= jnp.int32(keep_threshold)
        h = jnp.where(keep, h, 0.0)

    # Second linear: accumulate this chunk's contribution.
    acc_ref[...] += jnp.dot(h.astype(w2_ref.dtype), w2_ref[...],
                            preferred_element_type=jnp.float32)

    @pl.when(k == pl.num_programs(1) - 1)
    def _finalize():
        y = acc_ref[...]
        if inv_keep != 1.0:
            y = y * jnp.float32(inv_keep)
        o_ref[...] = (y + b2_ref[...]).astype(o_ref.dtype)


def prepare_ffn_params(w1, b1, w2, b2, *, matmul_dtype=jnp.float32):
    """One-time layout/dtype prep — call OUTSIDE the per-step hot path.

    PyTorch nn.Linear weights are (out_features, in_features); the kernel wants
    (in, out). Pass matmul_dtype=jnp.bfloat16 on v6e/v7x for full MXU throughput
    (f32 accumulation and f32 biases are kept inside the kernel).
    """
    return {
        "w1_t": jnp.asarray(w1, matmul_dtype).T,              # (d_model, d_ff)
        "b1": jnp.asarray(b1, jnp.float32).reshape(1, -1),    # (1, d_ff)
        "w2_t": jnp.asarray(w2, matmul_dtype).T,              # (d_ff, d_model)
        "b2": jnp.asarray(b2, jnp.float32).reshape(1, -1),    # (1, d_model)
    }


def positionwise_ffn(x, params, *, dropout_p=0.1, rng_key=None, dropout_bits=None,
                     row_tile=512, d_ff_chunk=512):
    """x: (batch, seq, d_model) float32; params from prepare_ffn_params."""
    assert d_ff_chunk % 128 == 0
    batch, seq, d_model = x.shape
    w1_t, b1 = params["w1_t"], params["b1"]
    w2_t, b2 = params["w2_t"], params["b2"]
    d_ff = w1_t.shape[1]
    n = batch * seq

    apply_dropout = float(dropout_p) > 0.0
    thr = _keep_threshold(dropout_p)
    inv_keep = 1.0 / (1.0 - float(dropout_p)) if apply_dropout else 1.0

    x2d = x.reshape(n, d_model)

    # Row tiling: pad n up to a multiple of the (8-aligned) tile.
    tile_m = _round_up(min(n, row_tile), 8)
    n_pad = _round_up(n, tile_m)
    if n_pad != n:
        x2d = jnp.pad(x2d, ((0, n_pad - n), (0, 0)))

    # d_ff chunking (must be 128-aligned or the full d_ff).
    chunk = d_ff_chunk if (d_ff > d_ff_chunk and d_ff % d_ff_chunk == 0) else d_ff

    inputs = [x2d, w1_t, b1, w2_t, b2]
    in_specs = [
        pl.BlockSpec((tile_m, d_model), lambda i, k: (i, 0)),   # x row tile
        pl.BlockSpec((d_model, chunk), lambda i, k: (0, k)),    # W1^T chunk (resident)
        pl.BlockSpec((1, chunk), lambda i, k: (0, k)),          # b1 chunk
        pl.BlockSpec((chunk, d_model), lambda i, k: (k, 0)),    # W2^T chunk (resident)
        pl.BlockSpec((1, d_model), lambda i, k: (0, 0)),        # b2
    ]

    if apply_dropout:
        if dropout_bits is None:
            if rng_key is None:
                rng_key = jax.random.PRNGKey(0)
            dropout_bits = (jax.random.bits(rng_key, (n_pad, d_ff), dtype=jnp.uint32)
                            >> 1).astype(jnp.int32)
        else:
            dropout_bits = jnp.asarray(dropout_bits, jnp.int32)
            if dropout_bits.shape[0] != n_pad:
                dropout_bits = jnp.pad(
                    dropout_bits, ((0, n_pad - dropout_bits.shape[0]), (0, 0)))
        inputs.append(dropout_bits)
        in_specs.append(pl.BlockSpec((tile_m, chunk), lambda i, k: (i, k)))

    grid = (n_pad // tile_m, d_ff // chunk)

    # NOTE: for production shapes keep d_model a multiple of 128 so output
    # stores are lane-dense (unmasked vst); the toy demo below is sub-128.
    out_spec = pl.BlockSpec((tile_m, d_model), lambda i, k: (i, 0))

    flops = 4 * n_pad * d_model * d_ff
    bytes_accessed = (sum(int(a.size) * a.dtype.itemsize for a in inputs)
                      + n_pad * d_model * x.dtype.itemsize)

    kernel = functools.partial(_ffn_kernel, keep_threshold=thr,
                               inv_keep=inv_keep, apply_dropout=apply_dropout)

    out2d = pl.pallas_call(
        kernel,
        out_shape=jax.ShapeDtypeStruct((n_pad, d_model), x.dtype),
        grid=grid,
        in_specs=in_specs,
        out_specs=out_spec,
        scratch_shapes=[pltpu.VMEM((tile_m, d_model), jnp.float32)],
        compiler_params=pltpu.CompilerParams(
            dimension_semantics=("parallel", "arbitrary"),
            vmem_limit_bytes=_vmem_limit_bytes(
                tile_m, chunk, d_model, w1_t.dtype, apply_dropout),
        ),
        cost_estimate=pl.CostEstimate(flops=flops, transcendentals=0,
                                      bytes_accessed=bytes_accessed),
    )(*inputs)

    return out2d[:n].reshape(batch, seq, d_model)


def _init_linear(key, out_features, in_features):
    # Deterministic init mimicking nn.Linear default: U(-1/sqrt(in), 1/sqrt(in)).
    kw, kb = jax.random.split(key)
    bound = 1.0 / (in_features ** 0.5)
    w = jax.random.uniform(kw, (out_features, in_features),
                           minval=-bound, maxval=bound, dtype=jnp.float32)
    b = jax.random.uniform(kb, (out_features,),
                           minval=-bound, maxval=bound, dtype=jnp.float32)
    return w, b


if __name__ == "__main__":
    d_model, d_ff = 32, 64
    batch, seq = 2, 8
    dropout_p = 0.1

    key = jax.random.PRNGKey(0)
    kx, k1, k2, kd = jax.random.split(key, 4)

    x = jax.random.normal(kx, (batch, seq, d_model), dtype=jnp.float32)
    w1, b1 = _init_linear(k1, d_ff, d_model)    # nn.Linear(d_model, d_ff)
    w2, b2 = _init_linear(k2, d_model, d_ff)    # nn.Linear(d_ff, d_model)

    params = prepare_ffn_params(w1, b1, w2, b2)  # one-time layout prep

    n = batch * seq
    bits = (jax.random.bits(kd, (n, d_ff), dtype=jnp.uint32) >> 1).astype(jnp.int32)

    out = positionwise_ffn(x, params, dropout_p=dropout_p, dropout_bits=bits)
    jax.block_until_ready(out)

    # Pure-JAX reference using the identical dropout mask.
    thr = _keep_threshold(dropout_p)
    keep = (bits >= thr).reshape(batch, seq, d_ff)
    h_ref = jnp.maximum(x @ w1.T + b1, 0.0)
    h_ref = jnp.where(keep, h_ref, 0.0) * (1.0 / (1.0 - dropout_p))
    ref = h_ref @ w2.T + b2

    assert out.shape == (batch, seq, d_model)
    assert out.dtype == jnp.float32
    assert bool(jnp.all(jnp.isfinite(out)))
    assert bool(jnp.allclose(out, ref, atol=1e-4, rtol=1e-4))
    print("KERNEL_OK")
</pallas_src>

<mosaic_0001>
module attributes {stable_mosaic.version = 11 : i64} {
  func.func @_ffn_kernel(%arg0: i32, %arg1: i32, %arg2: memref<16x32xf32, #tpu.memory_space<vmem>>, %arg3: memref<32x64xf32, #tpu.memory_space<vmem>>, %arg4: memref<1x64xf32, #tpu.memory_space<vmem>>, %arg5: memref<64x32xf32, #tpu.memory_space<vmem>>, %arg6: memref<1x32xf32, #tpu.memory_space<vmem>>, %arg7: memref<16x64xi32, #tpu.memory_space<vmem>>, %arg8: memref<16x32xf32, #tpu.memory_space<vmem>>, %arg9: memref<16x32xf32, #tpu.memory_space<vmem>>) attributes {dimension_semantics = [#tpu.dimension_semantics<parallel>, #tpu.dimension_semantics<arbitrary>], iteration_bounds = array<i64: 1, 1>, scalar_prefetch = 0 : i64, scratch_operands = 1 : i64, tpu.core_type = #tpu.core_type<tc>, window_params = [{transform_indices = @transform_0, window_bounds = array<i64: 16, 32>}, {transform_indices = @transform_1, window_bounds = array<i64: 32, 64>}, {transform_indices = @transform_2, window_bounds = array<i64: 1, 64>}, {transform_indices = @transform_3, window_bounds = array<i64: 64, 32>}, {pipeline_mode = #tpu.pipeline_mode<synchronous>, transform_indices = @transform_4, window_bounds = array<i64: 1, 32>}, {transform_indices = @transform_5, window_bounds = array<i64: 16, 64>}, {transform_indices = @transform_6, window_bounds = array<i64: 16, 32>}]} {
    %c0_i32 = arith.constant 0 : i32
    %0 = arith.cmpi eq, %arg1, %c0_i32 : i32
    %1 = arith.extui %0 : i1 to i32
    %c0_i32_0 = arith.constant 0 : i32
    %2 = arith.cmpi ne, %1, %c0_i32_0 : i32
    scf.if %2 {
      %cst_19 = arith.constant 0.000000e+00 : f32
      %24 = vector.broadcast %cst_19 : f32 to vector<16x32xf32>
      %c0_20 = arith.constant 0 : index
      %c0_21 = arith.constant 0 : index
      %25 = vector.load %arg9[%c0_20, %c0_21] : memref<16x32xf32, #tpu.memory_space<vmem>>, vector<16x32xf32>
      tpu.vector_store %arg9[%c0_20, %c0_21], %24 {strides = array<i32>} : memref<16x32xf32, #tpu.memory_space<vmem>>, vector<16x32xf32>,
    } else {
    }
    %c0 = arith.constant 0 : index
    %c0_1 = arith.constant 0 : index
    %3 = vector.load %arg2[%c0, %c0_1] : memref<16x32xf32, #tpu.memory_space<vmem>>, vector<16x32xf32>
    %c0_2 = arith.constant 0 : index
    %c0_3 = arith.constant 0 : index
    %4 = vector.load %arg3[%c0_2, %c0_3] : memref<32x64xf32, #tpu.memory_space<vmem>>, vector<32x64xf32>
    %cst = arith.constant dense<0.000000e+00> : vector<16x64xf32>
    %5 = tpu.matmul %3, %4, %cst {dimension_numbers = #tpu.dot_dimension_numbers<[1], [0], [0], [1], [0, 0, 1, 1], [], []>} : vector<16x32xf32>, vector<32x64xf32>, vector<16x64xf32> -> vector<16x64xf32>
    %c0_4 = arith.constant 0 : index
    %c0_5 = arith.constant 0 : index
    %6 = vector.load %arg4[%c0_4, %c0_5] : memref<1x64xf32, #tpu.memory_space<vmem>>, vector<1x64xf32>
    %7 = vector.broadcast %6 : vector<1x64xf32> to vector<16x64xf32>
    %8 = arith.addf %5, %7 : vector<16x64xf32>
    %cst_6 = arith.constant 0.000000e+00 : f32
    %9 = vector.broadcast %cst_6 : f32 to vector<16x64xf32>
    %10 = arith.maximumf %8, %9 : vector<16x64xf32>
    %c0_7 = arith.constant 0 : index
    %c0_8 = arith.constant 0 : index
    %11 = vector.load %arg7[%c0_7, %c0_8] : memref<16x64xi32, #tpu.memory_space<vmem>>, vector<16x64xi32>
    %c214748365_i32 = arith.constant 214748365 : i32
    %12 = vector.broadcast %c214748365_i32 : i32 to vector<16x64xi32>
    %13 = arith.cmpi sge, %11, %12 : vector<16x64xi32>
    %cst_9 = arith.constant 0.000000e+00 : f32
    %14 = vector.broadcast %cst_9 : f32 to vector<16x64xf32>
    %15 = arith.select %13, %10, %14 : vector<16x64xi1>, vector<16x64xf32>
    %c0_10 = arith.constant 0 : index
    %c0_11 = arith.constant 0 : index
    %16 = vector.load %arg9[%c0_10, %c0_11] : memref<16x32xf32, #tpu.memory_space<vmem>>, vector<16x32xf32>
    %c0_12 = arith.constant 0 : index
    %c0_13 = arith.constant 0 : index
    %17 = vector.load %arg5[%c0_12, %c0_13] : memref<64x32xf32, #tpu.memory_space<vmem>>, vector<64x32xf32>
    %cst_14 = arith.constant dense<0.000000e+00> : vector<16x32xf32>
    %18 = tpu.matmul %15, %17, %cst_14 {dimension_numbers = #tpu.dot_dimension_numbers<[1], [0], [0], [1], [0, 0, 1, 1], [], []>} : vector<16x64xf32>, vector<64x32xf32>, vector<16x32xf32> -> vector<16x32xf32>
    %19 = arith.addf %16, %18 : vector<16x32xf32>
    %c0_15 = arith.constant 0 : index
    %c0_16 = arith.constant 0 : index
    %20 = vector.load %arg9[%c0_15, %c0_16] : memref<16x32xf32, #tpu.memory_space<vmem>>, vector<16x32xf32>
    tpu.vector_store %arg9[%c0_15, %c0_16], %19 {strides = array<i32>} : memref<16x32xf32, #tpu.memory_space<vmem>>, vector<16x32xf32>,
    %c0_i32_17 = arith.constant 0 : i32
    %21 = arith.cmpi eq, %arg1, %c0_i32_17 : i32
    %22 = arith.extui %21 : i1 to i32
    %c0_i32_18 = arith.constant 0 : i32
    %23 = arith.cmpi ne, %22, %c0_i32_18 : i32
    scf.if %23 {
      %c0_19 = arith.constant 0 : index
      %c0_20 = arith.constant 0 : index
      %24 = vector.load %arg9[%c0_19, %c0_20] : memref<16x32xf32, #tpu.memory_space<vmem>>, vector<16x32xf32>
      %cst_21 = arith.constant 1.11111116 : f32
      %25 = vector.broadcast %cst_21 : f32 to vector<16x32xf32>
      %26 = arith.mulf %24, %25 : vector<16x32xf32>
      %c0_22 = arith.constant 0 : index
      %c0_23 = arith.constant 0 : index
      %27 = vector.load %arg6[%c0_22, %c0_23] : memref<1x32xf32, #tpu.memory_space<vmem>>, vector<1x32xf32>
      %28 = vector.broadcast %27 : vector<1x32xf32> to vector<16x32xf32>
      %29 = arith.addf %26, %28 : vector<16x32xf32>
      %c0_24 = arith.constant 0 : index
      %c0_25 = arith.constant 0 : index
      %30 = vector.load %arg8[%c0_24, %c0_25] : memref<16x32xf32, #tpu.memory_space<vmem>>, vector<16x32xf32>
      tpu.vector_store %arg8[%c0_24, %c0_25], %29 {strides = array<i32>} : memref<16x32xf32, #tpu.memory_space<vmem>>, vector<16x32xf32>,
    } else {
    }
    return
  }
  func.func @transform_0(%arg0: i32, %arg1: i32) -> (i32, i32) {
    %c0_i32 = arith.constant 0 : i32
    %c0_i32_0 = arith.constant 0 : i32
    return %arg0, %c0_i32 : i32, i32
  }
  func.func @transform_1(%arg0: i32, %arg1: i32) -> (i32, i32) {
    %c0_i32 = arith.constant 0 : i32
    %c0_i32_0 = arith.constant 0 : i32
    return %c0_i32, %arg1 : i32, i32
  }
  func.func @transform_2(%arg0: i32, %arg1: i32) -> (i32, i32) {
    %c0_i32 = arith.constant 0 : i32
    %c0_i32_0 = arith.constant 0 : i32
    return %c0_i32, %arg1 : i32, i32
  }
  func.func @transform_3(%arg0: i32, %arg1: i32) -> (i32, i32) {
    %c0_i32 = arith.constant 0 : i32
    %c0_i32_0 = arith.constant 0 : i32
    return %arg1, %c0_i32 : i32, i32
  }
  func.func @transform_4(%arg0: i32, %arg1: i32) -> (i32, i32) {
    %c0_i32 = arith.constant 0 : i32
    %c0_i32_0 = arith.constant 0 : i32
    %c0_i32_1 = arith.constant 0 : i32
    return %c0_i32, %c0_i32_0 : i32, i32
  }
  func.func @transform_5(%arg0: i32, %arg1: i32) -> (i32, i32) {
    %c0_i32 = arith.constant 0 : i32
    return %arg0, %arg1 : i32, i32
  }
  func.func @transform_6(%arg0: i32, %arg1: i32) -> (i32, i32) {
    %c0_i32 = arith.constant 0 : i32
    %c0_i32_0 = arith.constant 0 : i32
    return %arg0, %c0_i32 : i32, i32
  }
}

</mosaic_0001>

<llo_original>
// kernel: tpu_custom_call.1
$region0: #{tpu_custom_call.1}
  #allocation0 [shape = 'u32[]', space=smem, size = 0x4, offset = 0x4, fixed_abs, tag = 'smem constant byte address 0x4 - core index']
  #allocation1 [shape = 'u32[144,128]{1,0:T(1,128)}', space=vmem, size = 0x12000, scoped, tag = 'internal scratch']
  #allocation2 [shape = 'f32[16,32]{1,0:T(8,128)}', space=vmem, size = 0x2000, scoped, tag = 'scratch operand']
  %s0 = inlined_call_operand.vmem [shape: f32[16,32], index: 0, kind: input, shape index: {}]
  %s1 = inlined_call_operand.vmem [shape: f32[32,64], index: 1, kind: input, shape index: {}]
  %s2 = inlined_call_operand.vmem [shape: f32[1,64], index: 2, kind: input, shape index: {}]
  %s3 = inlined_call_operand.vmem [shape: f32[64,32], index: 3, kind: input, shape index: {}]
  %s4 = inlined_call_operand.vmem [shape: f32[1,32], index: 4, kind: input, shape index: {}]
  %s5 = inlined_call_operand.vmem [shape: s32[16,64], index: 5, kind: input, shape index: {}]
  %s6 = inlined_call_operand.hbm [shape: f32[16,32], index: 6, kind: output, shape index: {}]
  %s7 = sld [smem:[#allocation0]]
  $region42: #{tpu_custom_call.1} parent=0
    _
  %s9 = ssub.s32 1, %s7
  %s10 = scalar_select 0, %s9, %s7
  $region1: #{tpu_custom_call.1} parent=0
    #allocation3 [shape = 'u8[8192]{0}', space=vmem, size = 0x2000, scoped, tag = 'output window, operand 0, single buffered']
    #allocation4 [shape = 's32[1]{0}', space=sflag, size = 0x4, scoped, tag = 'scoped memory for tpu_custom_call.1']
    %11 = vsyncpa [#allocation4], 0
    // Predicated region
    $region2: #{tpu_custom_call.1} parent=1 // pred_check
      _
    $region3: #{tpu_custom_call.1} parent=1 // pred_check_branch
      %13 = sbr.rel (0) target = $region5
    $region4: #{tpu_custom_call.1} parent=1 // pred_region
      _
    $region5: #{tpu_custom_call.1} parent=1 // pred_fallthru
      _
    // Predicated region
    $region6: #{tpu_custom_call.1} parent=1 // pred_check
      _
    $region7: #{tpu_custom_call.1} parent=1 // pred_check_branch
      %15 = sbr.rel (0) target = $region9
    $region8: #{tpu_custom_call.1} parent=1 // pred_region
      _
    $region9: #{tpu_custom_call.1} parent=1 // pred_fallthru
      _
    // Predicated region
    $region10: #{tpu_custom_call.1} parent=1 // pred_check
      _
    $region11: #{tpu_custom_call.1} parent=1 // pred_check_branch
      %17 = sbr.rel (0) target = $region13
    $region12: #{tpu_custom_call.1} parent=1 // pred_region
      _
    $region13: #{tpu_custom_call.1} parent=1 // pred_fallthru
      _
    // Predicated region
    $region14: #{tpu_custom_call.1} parent=1 // pred_check
      _
    $region15: #{tpu_custom_call.1} parent=1 // pred_check_branch
      %19 = sbr.rel (0) target = $region17
    $region16: #{tpu_custom_call.1} parent=1 // pred_region
      _
    $region17: #{tpu_custom_call.1} parent=1 // pred_fallthru
      _
    // Predicated region
    $region18: #{tpu_custom_call.1} parent=1 // pred_check
      _
    $region19: #{tpu_custom_call.1} parent=1 // pred_check_branch
      %21 = sbr.rel (0) target = $region21
    $region20: #{tpu_custom_call.1} parent=1 // pred_region
      _
    $region21: #{tpu_custom_call.1} parent=1 // pred_fallthru
      _
    // Predicated region
    $region22: #{tpu_custom_call.1} parent=1 // pred_check
      _
    $region23: #{tpu_custom_call.1} parent=1 // pred_check_branch
      %23 = sbr.rel (0) target = $region25
    $region24: #{tpu_custom_call.1} parent=1 // pred_region
      _
    $region25: #{tpu_custom_call.1} parent=1 // pred_fallthru
      _
    %p24 = scmp.eq.s32.totalorder 0, 0
    // Predicated region
    $region26: #{tpu_custom_call.1} parent=1 // pred_check
      %p25 = pneg %p24
    $region27: #{tpu_custom_call.1} parent=1 // pred_check_branch
      %27 = sbr.rel (%p25) target = $region29
    $region28: #{tpu_custom_call.1} parent=1 // pred_region
      %vm28 = vcmask 261120
      %29 = vst.msk [vmem:[#allocation2] sm:$0xff] %vm28, 0.0
      %30 = vst.msk [vmem:[#allocation2 + $0x8] sm:$0xff] %vm28, 0.0
    $region29: #{tpu_custom_call.1} parent=1 // pred_fallthru
      _
    %v31 = vld [vmem:[%s0] sm:$0xff]
    %v32 = vld [vmem:[%s0 + $0x8] sm:$0xff]
    %v33 = vld [vmem:[%s1] sm:$0xff]
    %v34 = vld [vmem:[%s1 + $0x8] sm:$0xff]
    %v35 = vld [vmem:[%s1 + $0x10] sm:$0xff]
    %v36 = vld [vmem:[%s1 + $0x18] sm:$0xff]
    %v37 = vld [vmem:[%s2] sm:$0x1]
    %v39 = vlaneseq
    %v40 = vshrl.u32 %v39, 7
    %v41 = vsub.s32 0, %v40
    %v42 = vrot.slane %v37, %v41
    %vm44 = vcmask 261120
    %v46 = vsel %vm44, %v31, 0
    %v49 = vsel %vm44, %v32, 0
    %51 = vmatprep.subr.mxu0 0.0
    %52 = vmatpush1.msra.mxu0 0.0
    %53 = vmatprep.subr.mxu0 0.0
    %54 = vmatpush1.msra.mxu0 0.0
    %55 = vmatprep.subr.mxu0 0.0
    %56 = vmatpush1.msra.mxu0 0.0
    %57 = vmatprep.subr.mxu0 0.0
    %58 = vmatpush1.msra.mxu0 0.0
    %59 = vmatprep.subr.mxu0 0.0
    %60 = vmatpush1.msra.mxu0 0.0
    %61 = vmatprep.subr.mxu0 0.0
    %62 = vmatpush1.msra.mxu0 0.0
    %63 = vmatprep.subr.mxu0 0.0
    %64 = vmatpush1.msra.mxu0 0.0
    %65 = vmatprep.subr.mxu0 0.0
    %66 = vmatpush1.msra.mxu0 0.0
    %67 = vmatprep.subr.mxu0 0.0
    %68 = vmatpush1.msra.mxu0 0.0
    %69 = vmatprep.subr.mxu0 0.0
    %70 = vmatpush1.msra.mxu0 0.0
    %71 = vmatprep.subr.mxu0 0.0
    %72 = vmatpush1.msra.mxu0 0.0
    %73 = vmatprep.subr.mxu0 0.0
    %74 = vmatpush1.msra.mxu0 0.0
    %75 = vmatprep.subr.mxu0 0.0
    %76 = vmatpush1.msra.mxu0 %v36
    %77 = vmatprep.subr.mxu0 0.0
    %78 = vmatpush1.msra.mxu0 %v35
    %79 = vmatprep.subr.mxu0 0.0
    %80 = vmatpush1.msra.mxu0 %v34
    %81 = vmatprep.subr.mxu0 0.0
    %82 = vmatpush1.msra.mxu0 %v33
    %83 = vmatprep.subr.mxu0 0.0
    %84 = vmatpush2.msra.mxu0 0.0
    %85 = vmatprep.subr.mxu0 0.0
    %86 = vmatpush2.msra.mxu0 0.0
    %87 = vmatprep.subr.mxu0 0.0
    %88 = vmatpush2.msra.mxu0 0.0
    %89 = vmatprep.subr.mxu0 0.0
    %90 = vmatpush2.msra.mxu0 0.0
    %91 = vmatprep.subr.mxu0 0.0
    %92 = vmatpush2.msra.mxu0 0.0
    %93 = vmatprep.subr.mxu0 0.0
    %94 = vmatpush2.msra.mxu0 0.0
    %95 = vmatprep.subr.mxu0 0.0
    %96 = vmatpush2.msra.mxu0 0.0
    %97 = vmatprep.subr.mxu0 0.0
    %98 = vmatpush2.msra.mxu0 0.0
    %99 = vmatprep.subr.mxu0 0.0
    %100 = vmatpush2.msra.mxu0 0.0
    %101 = vmatprep.subr.mxu0 0.0
    %102 = vmatpush2.msra.mxu0 0.0
    %103 = vmatprep.subr.mxu0 0.0
    %104 = vmatpush2.msra.mxu0 0.0
    %105 = vmatprep.subr.mxu0 0.0
    %106 = vmatpush2.msra.mxu0 0.0
    %107 = vmatprep.subr.mxu0 0.0
    %108 = vmatpush2.msra.mxu0 0.0
    %109 = vmatprep.subr.mxu0 0.0
    %110 = vmatpush2.msra.mxu0 0.0
    %111 = vmatprep.subr.mxu0 0.0
    %112 = vmatpush2.msra.mxu0 0.0
    %113 = vmatprep.subr.mxu0 0.0
    %114 = vmatpush2.msra.mxu0 0.0
    %115 = vmatprep.mubr.f32.mxu0 0.0
    %116 = vmatmul.mubr.f32.gmra.mxu0 %v46
    %v117 = vpop.f32.mrf.mxu0
    %v118 = vadd.f32 %v42, %v117
    %v119 = vpop.f32.mrf.mxu0
    %120 = vmatprep.mubr.f32.mxu0 0.0
    %121 = vmatmul.mubr.f32.gmra.mxu0 %v49
    %v122 = vpop.f32.mrf.mxu0
    %v123 = vadd.f32 %v42, %v122
    %v124 = vpop.f32.mrf.mxu0
    %125 = vdwg.mxu0
    %v126 = vmax.f32 %v118, 0.0
    %v127 = vmax.f32 %v123, 0.0
    %v128 = vld [vmem:[%s5] sm:$0xff]
    %v129 = vld [vmem:[%s5 + $0x8] sm:$0xff]
    %vm130 = vcmp.ge.s32.totalorder %v128, 214748365
    %vm131 = vcmp.ge.s32.totalorder %v129, 214748365
    %v132 = vsel %vm130, %v126, 0.0
    %v133 = vsel %vm131, %v127, 0.0
    %v134 = vld [vmem:[#allocation2] sm:$0xff]
    %v135 = vld [vmem:[#allocation2 + $0x8] sm:$0xff]
    %v136 = vld [vmem:[%s3] sm:$0xff]
    %v137 = vld [vmem:[%s3 + $0x8] sm:$0xff]
    %v138 = vld [vmem:[%s3 + $0x10] sm:$0xff]
    %v139 = vld [vmem:[%s3 + $0x18] sm:$0xff]
    %v140 = vld [vmem:[%s3 + $0x20] sm:$0xff]
    %v141 = vld [vmem:[%s3 + $0x28] sm:$0xff]
    %v142 = vld [vmem:[%s3 + $0x30] sm:$0xff]
    %v143 = vld [vmem:[%s3 + $0x38] sm:$0xff]
    %vm144 = vcmask 523264
    %v146 = vsel %vm144, %v132, 0
    %v149 = vsel %vm144, %v133, 0
    %151 = vmatprep.subr.mxu0 0.0
    %152 = vmatpush1.msra.mxu0 0.0
    %153 = vmatprep.subr.mxu0 0.0
    %154 = vmatpush1.msra.mxu0 0.0
    %155 = vmatprep.subr.mxu0 0.0
    %156 = vmatpush1.msra.mxu0 0.0
    %157 = vmatprep.subr.mxu0 0.0
    %158 = vmatpush1.msra.mxu0 0.0
    %159 = vmatprep.subr.mxu0 0.0
    %160 = vmatpush1.msra.mxu0 0.0
    %161 = vmatprep.subr.mxu0 0.0
    %162 = vmatpush1.msra.mxu0 0.0
    %163 = vmatprep.subr.mxu0 0.0
    %164 = vmatpush1.msra.mxu0 0.0
    %165 = vmatprep.subr.mxu0 0.0
    %166 = vmatpush1.msra.mxu0 0.0
    %167 = vmatprep.subr.mxu0 0.0
    %168 = vmatpush1.msra.mxu0 %v143
    %169 = vmatprep.subr.mxu0 0.0
    %170 = vmatpush1.msra.mxu0 %v142
    %171 = vmatprep.subr.mxu0 0.0
    %172 = vmatpush1.msra.mxu0 %v141
    %173 = vmatprep.subr.mxu0 0.0
    %174 = vmatpush1.msra.mxu0 %v140
    %175 = vmatprep.subr.mxu0 0.0
    %176 = vmatpush1.msra.mxu0 %v139
    %177 = vmatprep.subr.mxu0 0.0
    %178 = vmatpush1.msra.mxu0 %v138
    %179 = vmatprep.subr.mxu0 0.0
    %180 = vmatpush1.msra.mxu0 %v137
    %181 = vmatprep.subr.mxu0 0.0
    %182 = vmatpush1.msra.mxu0 %v136
    %183 = vmatprep.subr.mxu0 0.0
    %184 = vmatpush2.msra.mxu0 0.0
    %185 = vmatprep.subr.mxu0 0.0
    %186 = vmatpush2.msra.mxu0 0.0
    %187 = vmatprep.subr.mxu0 0.0
    %188 = vmatpush2.msra.mxu0 0.0
    %189 = vmatprep.subr.mxu0 0.0
    %190 = vmatpush2.msra.mxu0 0.0
    %191 = vmatprep.subr.mxu0 0.0
    %192 = vmatpush2.msra.mxu0 0.0
    %193 = vmatprep.subr.mxu0 0.0
    %194 = vmatpush2.msra.mxu0 0.0
    %195 = vmatprep.subr.mxu0 0.0
    %196 = vmatpush2.msra.mxu0 0.0
    %197 = vmatprep.subr.mxu0 0.0
    %198 = vmatpush2.msra.mxu0 0.0
    %199 = vmatprep.subr.mxu0 0.0
    %200 = vmatpush2.msra.mxu0 0.0
    %201 = vmatprep.subr.mxu0 0.0
    %202 = vmatpush2.msra.mxu0 0.0
    %203 = vmatprep.subr.mxu0 0.0
    %204 = vmatpush2.msra.mxu0 0.0
    %205 = vmatprep.subr.mxu0 0.0
    %206 = vmatpush2.msra.mxu0 0.0
    %207 = vmatprep.subr.mxu0 0.0
    %208 = vmatpush2.msra.mxu0 0.0
    %209 = vmatprep.subr.mxu0 0.0
    %210 = vmatpush2.msra.mxu0 0.0
    %211 = vmatprep.subr.mxu0 0.0
    %212 = vmatpush2.msra.mxu0 0.0
    %213 = vmatprep.subr.mxu0 0.0
    %214 = vmatpush2.msra.mxu0 0.0
    %215 = vmatprep.mubr.f32.mxu0 0.0
    %216 = vmatmul.mubr.f32.gmra.mxu0 %v146
    %v217 = vpop.f32.mrf.mxu0
    %v218 = vadd.f32 0.0, %v217
    %v219 = vpop.f32.mrf.mxu0
    %220 = vmatprep.mubr.f32.mxu0 0.0
    %221 = vmatmul.mubr.f32.gmra.mxu0 %v149
    %v222 = vpop.f32.mrf.mxu0
    %v223 = vadd.f32 0.0, %v222
    %v224 = vpop.f32.mrf.mxu0
    %225 = vdwg.mxu0
    %v226 = vadd.f32 %v134, %v218
    %v227 = vadd.f32 %v135, %v223
    %228 = vst.msk [vmem:[#allocation2] sm:$0xff] %vm44, %v226
    %229 = vst.msk [vmem:[#allocation2 + $0x8] sm:$0xff] %vm44, %v227
    // Predicated region
    $region30: #{tpu_custom_call.1} parent=1 // pred_check
      %p230 = pneg %p24
    $region31: #{tpu_custom_call.1} parent=1 // pred_check_branch
      %232 = sbr.rel (%p230) target = $region33
    $region32: #{tpu_custom_call.1} parent=1 // pred_region
      %v233 = vld [vmem:[#allocation2] sm:$0xff]
      %v234 = vld [vmem:[#allocation2 + $0x8] sm:$0xff]
      %v235 = vmul.f32 %v233, 1.1111112
      %v236 = vmul.f32 %v234, 1.1111112
      %v237 = vld [vmem:[%s4] sm:$0x1]
      %v239 = vlaneseq
      %v240 = vshrl.u32 %v239, 7
      %v241 = vsub.s32 0, %v240
      %v242 = vrot.slane %v237, %v241
      %v244 = vadd.f32 %v235, %v242
      %v245 = vadd.f32 %v236, %v242
      %246 = vst.msk [vmem:[#allocation3] sm:$0xff] %vm44, %v244
      %247 = vst.msk [vmem:[#allocation3 + $0x8] sm:$0xff] %vm44, %v245
    $region33: #{tpu_custom_call.1} parent=1 // pred_fallthru
      _
    // Predicated region
    $region34: #{tpu_custom_call.1} parent=1 // pred_check
      _
    $region35: #{tpu_custom_call.1} parent=1 // pred_check_branch
      %249 = sbr.rel (0) target = $region37
    $region36: #{tpu_custom_call.1} parent=1 // pred_region
      %s251 = ssub.s32 256, 256
      %252 = vsyncadd [#allocation4], %s251
      %s253 = sshll.u32 [#allocation3], 4
      %s254 = int_to_ptr.vmem [resolvable:$true] %s253
      %259 = dma.vmem_to_hbm [thread:$0]  %s254, 256, %s6, [#allocation4], 128, 128, 8
    $region37: #{tpu_custom_call.1} parent=1 // pred_fallthru
      _
    // Predicated region
    $region38: #{tpu_custom_call.1} parent=1 // pred_check
      _
    $region39: #{tpu_custom_call.1} parent=1 // pred_check_branch
      %261 = sbr.rel (0) target = $region41
    $region40: #{tpu_custom_call.1} parent=1 // pred_region
      %262 = dma.done [#allocation4], 256
    $region41: #{tpu_custom_call.1} parent=1 // pred_fallthru
      _
    %263 = vsyncpa [#allocation4], 1

</llo_original>
